<compile_context>
chip_gen: v7x
topology: tpu7x:2x2x1
jax: 0.10.0
libtpu: 0.0.40
codegen_flags: <defaults>
</compile_context>

<pallas_src>
import functools

import jax
import jax.numpy as jnp
from jax.experimental import pallas as pl
from jax.experimental.pallas import tpu as pltpu


HIDDEN = (512, 256, 128, 64)


def _round_up(x, m):
    return (x + m - 1) // m * m


# ---------------------------------------------------------------------------
# Kernel
# ---------------------------------------------------------------------------
def dqn_kernel(x_ref,
               w1_ref, b1_ref,
               w2_ref, b2_ref,
               w3_ref, b3_ref,
               w4_ref, b4_ref,
               w5_ref, b5_ref,
               out_ref):
    """Fused 5-layer MLP on one (TB, 128) bf16 batch tile.

    Weights are bf16 (native MXU dtype); each matmul accumulates in f32;
    bias-add + ReLU are f32 (no bf16 VPU on v5e), then the activation is
    packed back to bf16 before feeding the next MXU pass.  All layer weights
    (~0.5 MiB bf16) are VMEM-resident across the whole batch grid.
    """

    def layer(h, w_ref, b_ref, relu):
        acc = jnp.dot(h, w_ref[...], preferred_element_type=jnp.float32)
        acc = acc + b_ref[...]
        if relu:
            return jnp.maximum(acc, 0.0).astype(jnp.bfloat16)
        return acc

    h = x_ref[...]                       # bf16 (TB, 128)
    h = layer(h, w1_ref, b1_ref, True)   # (TB, 512) bf16
    h = layer(h, w2_ref, b2_ref, True)   # (TB, 256) bf16
    h = layer(h, w3_ref, b3_ref, True)   # (TB, 128) bf16
    h = layer(h, w4_ref, b4_ref, True)   # (TB, 128) bf16
    out = layer(h, w5_ref, b5_ref, False)  # (TB, 128) f32
    out_ref[...] = out.astype(out_ref.dtype)


# ---------------------------------------------------------------------------
# Wrapper
# ---------------------------------------------------------------------------
def prepare_params(params):
    """Pad every feature dim to a multiple of 128 and cast W to bf16.

    Run ONCE (outside the training/inference hot loop); the returned flat
    tuple (W1,b1,...,W5,b5) is what dqn_forward consumes.  Zero padding keeps
    the math exact.
    """
    flat = []
    for w, b in params:
        kin, kout = w.shape
        pk, pn = _round_up(kin, 128), _round_up(kout, 128)
        wp = jnp.zeros((pk, pn), jnp.bfloat16).at[:kin, :kout].set(
            w.astype(jnp.bfloat16))
        bp = jnp.zeros((1, pn), jnp.float32).at[:, :kout].set(
            b.astype(jnp.float32))
        flat.extend([wp, bp])
    return tuple(flat)


def _choose_tiles(B, block_b):
    """Pick (TB, Bpad). Bpad is fixed first, then TB divides it exactly."""
    if B <= 128:
        # Online-inference path: a single MXU pass either way, so only pad the
        # batch to a sublane-friendly multiple of 16 (bf16 packing).
        tb = _round_up(max(B, 16), 16)
        return tb, tb
    Bpad = _round_up(B, 128)
    candidates = []
    for n in range(1, Bpad // 128 + 1):          # keeps TB >= 128
        if Bpad % n:
            continue
        tb = Bpad // n
        if tb % 8 or tb > block_b:
            continue
        candidates.append((n, tb))
    if not candidates:
        return 128, Bpad
    # Prefer an even, >=2 number of grid steps (2-TensorCore balance on v7x
    # megacore), then the largest tile (amortizes ~0.35us/grid-step overhead).
    n, tb = max(candidates, key=lambda nt: (nt[0] >= 2 and nt[0] % 2 == 0, nt[1]))
    return tb, Bpad


@functools.partial(jax.jit, static_argnames=("action_size", "block_b"))
def dqn_forward(state, flat_params, *, action_size, block_b=256):
    """state: (B, state_size) f32; flat_params: output of prepare_params."""
    B, S = state.shape
    n_layers = len(flat_params) // 2
    pdims = [flat_params[0].shape[0]] + [flat_params[2 * i].shape[1]
                                         for i in range(n_layers)]

    TB, Bpad = _choose_tiles(B, block_b)

    # Pad batch + feature dim, cast to bf16 (kernel reads bf16 directly).
    x = jnp.zeros((Bpad, pdims[0]), jnp.bfloat16).at[:B, :S].set(
        state.astype(jnp.bfloat16))

    grid = (Bpad // TB,)
    x_spec = pl.BlockSpec((TB, pdims[0]), lambda i: (i, 0))
    out_spec = pl.BlockSpec((TB, pdims[-1]), lambda i: (i, 0))
    # Full-array blocks with constant index_map: weights/biases stay resident
    # in VMEM across all batch tiles (no per-step re-DMA).
    param_specs = [pl.BlockSpec(p.shape, lambda i: (0, 0)) for p in flat_params]

    flops = 2 * Bpad * sum(pdims[i] * pdims[i + 1] for i in range(n_layers))
    bytes_accessed = (sum(int(p.size) * p.dtype.itemsize for p in flat_params)
                      + Bpad * pdims[0] * 2        # bf16 input
                      + Bpad * pdims[-1] * 2)      # bf16 output

    out = pl.pallas_call(
        dqn_kernel,
        out_shape=jax.ShapeDtypeStruct((Bpad, pdims[-1]), jnp.bfloat16),
        grid=grid,
        in_specs=[x_spec] + param_specs,
        out_specs=out_spec,
        compiler_params=pltpu.CompilerParams(
            dimension_semantics=("parallel",)),
        cost_estimate=pl.CostEstimate(
            flops=flops, transcendentals=0, bytes_accessed=bytes_accessed),
    )(x, *flat_params)

    return out[:B, :action_size].astype(jnp.float32)


# ---------------------------------------------------------------------------
# Init + reference
# ---------------------------------------------------------------------------
def init_dqn_params(key, state_size, action_size):
    """Mirror PyTorch nn.Linear default init U[-1/sqrt(fan_in), +1/sqrt(fan_in)]."""
    dims = [state_size, *HIDDEN, action_size]
    params = []
    for i in range(len(dims) - 1):
        fan_in, fan_out = dims[i], dims[i + 1]
        key, wk, bk = jax.random.split(key, 3)
        bound = 1.0 / jnp.sqrt(jnp.float32(fan_in))
        w = jax.random.uniform(wk, (fan_in, fan_out), jnp.float32, -bound, bound)
        b = jax.random.uniform(bk, (1, fan_out), jnp.float32, -bound, bound)
        params.append((w, b))
    return params


def dqn_reference(state, params, bf16=True):
    """Pure-JAX reference. bf16=True mirrors the kernel's numerics exactly
    (bf16 MXU operands + bf16 activation carry + bf16 output)."""
    h = state.astype(jnp.bfloat16) if bf16 else state
    n = len(params)
    out = None
    for i, (w, b) in enumerate(params):
        wd = w.astype(jnp.bfloat16) if bf16 else w
        acc = jnp.dot(h, wd, preferred_element_type=jnp.float32) + b
        if i < n - 1:
            h = jnp.maximum(acc, 0.0)
            if bf16:
                h = h.astype(jnp.bfloat16)
        else:
            out = acc
    if bf16:
        out = out.astype(jnp.bfloat16)
    return out.astype(jnp.float32)


if __name__ == "__main__":
    key = jax.random.PRNGKey(0)

    state_size = 37   # Banana environment state size
    action_size = 4   # Banana environment action size

    key, pkey, xkey, xkey2 = jax.random.split(key, 4)
    params = init_dqn_params(pkey, state_size, action_size)
    padded_params = prepare_params(params)   # hoisted out of the hot path

    # Small online-inference style batch (single tile, TB=16).
    batch = 8
    state = jax.random.normal(xkey, (batch, state_size), jnp.float32)
    out = jax.block_until_ready(
        dqn_forward(state, padded_params, action_size=action_size))
    assert out.shape == (batch, action_size)
    ref_bf16 = dqn_reference(state, params, bf16=True)
    ref_f32 = dqn_reference(state, params, bf16=False)
    assert jnp.allclose(out, ref_bf16, atol=5e-3, rtol=5e-3), \
        float(jnp.max(jnp.abs(out - ref_bf16)))
    assert jnp.allclose(out, ref_f32, atol=1e-1, rtol=1e-1)

    # Replay-buffer-sized batch (Bpad=384, TB=192, grid=2).
    batch2 = 300
    state2 = jax.random.normal(xkey2, (batch2, state_size), jnp.float32)
    out2 = jax.block_until_ready(
        dqn_forward(state2, padded_params, action_size=action_size))
    assert out2.shape == (batch2, action_size)
    ref2 = dqn_reference(state2, params, bf16=True)
    assert jnp.allclose(out2, ref2, atol=5e-3, rtol=5e-3), \
        float(jnp.max(jnp.abs(out2 - ref2)))

    print("KERNEL_OK")
</pallas_src>

<mosaic_0001>
module attributes {stable_mosaic.version = 11 : i64} {
  func.func @dqn_kernel(%arg0: i32, %arg1: memref<16x128xbf16, #tpu.memory_space<vmem>>, %arg2: memref<128x512xbf16, #tpu.memory_space<vmem>>, %arg3: memref<1x512xf32, #tpu.memory_space<vmem>>, %arg4: memref<512x256xbf16, #tpu.memory_space<vmem>>, %arg5: memref<1x256xf32, #tpu.memory_space<vmem>>, %arg6: memref<256x128xbf16, #tpu.memory_space<vmem>>, %arg7: memref<1x128xf32, #tpu.memory_space<vmem>>, %arg8: memref<128x128xbf16, #tpu.memory_space<vmem>>, %arg9: memref<1x128xf32, #tpu.memory_space<vmem>>, %arg10: memref<128x128xbf16, #tpu.memory_space<vmem>>, %arg11: memref<1x128xf32, #tpu.memory_space<vmem>>, %arg12: memref<16x128xbf16, #tpu.memory_space<vmem>>) attributes {dimension_semantics = [#tpu.dimension_semantics<parallel>], iteration_bounds = array<i64: 1>, scalar_prefetch = 0 : i64, scratch_operands = 0 : i64, tpu.core_type = #tpu.core_type<tc>, window_params = [{transform_indices = @transform_0, window_bounds = array<i64: 16, 128>}, {pipeline_mode = #tpu.pipeline_mode<synchronous>, transform_indices = @transform_1, window_bounds = array<i64: 128, 512>}, {pipeline_mode = #tpu.pipeline_mode<synchronous>, transform_indices = @transform_2, window_bounds = array<i64: 1, 512>}, {pipeline_mode = #tpu.pipeline_mode<synchronous>, transform_indices = @transform_3, window_bounds = array<i64: 512, 256>}, {pipeline_mode = #tpu.pipeline_mode<synchronous>, transform_indices = @transform_4, window_bounds = array<i64: 1, 256>}, {pipeline_mode = #tpu.pipeline_mode<synchronous>, transform_indices = @transform_5, window_bounds = array<i64: 256, 128>}, {pipeline_mode = #tpu.pipeline_mode<synchronous>, transform_indices = @transform_6, window_bounds = array<i64: 1, 128>}, {pipeline_mode = #tpu.pipeline_mode<synchronous>, transform_indices = @transform_7, window_bounds = array<i64: 128, 128>}, {pipeline_mode = #tpu.pipeline_mode<synchronous>, transform_indices = @transform_8, window_bounds = array<i64: 1, 128>}, {pipeline_mode = #tpu.pipeline_mode<synchronous>, transform_indices = @transform_9, window_bounds = array<i64: 128, 128>}, {pipeline_mode = #tpu.pipeline_mode<synchronous>, transform_indices = @transform_10, window_bounds = array<i64: 1, 128>}, {transform_indices = @transform_11, window_bounds = array<i64: 16, 128>}]} {
    %c0 = arith.constant 0 : index
    %c0_0 = arith.constant 0 : index
    %0 = vector.load %arg1[%c0, %c0_0] : memref<16x128xbf16, #tpu.memory_space<vmem>>, vector<16x128xbf16>
    %c0_1 = arith.constant 0 : index
    %c0_2 = arith.constant 0 : index
    %1 = vector.load %arg2[%c0_1, %c0_2] : memref<128x512xbf16, #tpu.memory_space<vmem>>, vector<128x512xbf16>
    %cst = arith.constant dense<0.000000e+00> : vector<16x512xf32>
    %2 = tpu.matmul %0, %1, %cst {dimension_numbers = #tpu.dot_dimension_numbers<[1], [0], [0], [1], [0, 0, 1, 1], [], []>} : vector<16x128xbf16>, vector<128x512xbf16>, vector<16x512xf32> -> vector<16x512xf32>
    %c0_3 = arith.constant 0 : index
    %c0_4 = arith.constant 0 : index
    %3 = vector.load %arg3[%c0_3, %c0_4] : memref<1x512xf32, #tpu.memory_space<vmem>>, vector<1x512xf32>
    %4 = vector.broadcast %3 : vector<1x512xf32> to vector<16x512xf32>
    %5 = arith.addf %2, %4 : vector<16x512xf32>
    %cst_5 = arith.constant 0.000000e+00 : f32
    %6 = vector.broadcast %cst_5 : f32 to vector<16x512xf32>
    %7 = arith.maximumf %5, %6 : vector<16x512xf32>
    %8 = arith.truncf %7 : vector<16x512xf32> to vector<16x512xbf16>
    %c0_6 = arith.constant 0 : index
    %c0_7 = arith.constant 0 : index
    %9 = vector.load %arg4[%c0_6, %c0_7] : memref<512x256xbf16, #tpu.memory_space<vmem>>, vector<512x256xbf16>
    %cst_8 = arith.constant dense<0.000000e+00> : vector<16x256xf32>
    %10 = tpu.matmul %8, %9, %cst_8 {dimension_numbers = #tpu.dot_dimension_numbers<[1], [0], [0], [1], [0, 0, 1, 1], [], []>} : vector<16x512xbf16>, vector<512x256xbf16>, vector<16x256xf32> -> vector<16x256xf32>
    %c0_9 = arith.constant 0 : index
    %c0_10 = arith.constant 0 : index
    %11 = vector.load %arg5[%c0_9, %c0_10] : memref<1x256xf32, #tpu.memory_space<vmem>>, vector<1x256xf32>
    %12 = vector.broadcast %11 : vector<1x256xf32> to vector<16x256xf32>
    %13 = arith.addf %10, %12 : vector<16x256xf32>
    %cst_11 = arith.constant 0.000000e+00 : f32
    %14 = vector.broadcast %cst_11 : f32 to vector<16x256xf32>
    %15 = arith.maximumf %13, %14 : vector<16x256xf32>
    %16 = arith.truncf %15 : vector<16x256xf32> to vector<16x256xbf16>
    %c0_12 = arith.constant 0 : index
    %c0_13 = arith.constant 0 : index
    %17 = vector.load %arg6[%c0_12, %c0_13] : memref<256x128xbf16, #tpu.memory_space<vmem>>, vector<256x128xbf16>
    %cst_14 = arith.constant dense<0.000000e+00> : vector<16x128xf32>
    %18 = tpu.matmul %16, %17, %cst_14 {dimension_numbers = #tpu.dot_dimension_numbers<[1], [0], [0], [1], [0, 0, 1, 1], [], []>} : vector<16x256xbf16>, vector<256x128xbf16>, vector<16x128xf32> -> vector<16x128xf32>
    %c0_15 = arith.constant 0 : index
    %c0_16 = arith.constant 0 : index
    %19 = vector.load %arg7[%c0_15, %c0_16] : memref<1x128xf32, #tpu.memory_space<vmem>>, vector<1x128xf32>
    %20 = vector.broadcast %19 : vector<1x128xf32> to vector<16x128xf32>
    %21 = arith.addf %18, %20 : vector<16x128xf32>
    %cst_17 = arith.constant 0.000000e+00 : f32
    %22 = vector.broadcast %cst_17 : f32 to vector<16x128xf32>
    %23 = arith.maximumf %21, %22 : vector<16x128xf32>
    %24 = arith.truncf %23 : vector<16x128xf32> to vector<16x128xbf16>
    %c0_18 = arith.constant 0 : index
    %c0_19 = arith.constant 0 : index
    %25 = vector.load %arg8[%c0_18, %c0_19] : memref<128x128xbf16, #tpu.memory_space<vmem>>, vector<128x128xbf16>
    %cst_20 = arith.constant dense<0.000000e+00> : vector<16x128xf32>
    %26 = tpu.matmul %24, %25, %cst_20 {dimension_numbers = #tpu.dot_dimension_numbers<[1], [0], [0], [1], [0, 0, 1, 1], [], []>} : vector<16x128xbf16>, vector<128x128xbf16>, vector<16x128xf32> -> vector<16x128xf32>
    %c0_21 = arith.constant 0 : index
    %c0_22 = arith.constant 0 : index
    %27 = vector.load %arg9[%c0_21, %c0_22] : memref<1x128xf32, #tpu.memory_space<vmem>>, vector<1x128xf32>
    %28 = vector.broadcast %27 : vector<1x128xf32> to vector<16x128xf32>
    %29 = arith.addf %26, %28 : vector<16x128xf32>
    %cst_23 = arith.constant 0.000000e+00 : f32
    %30 = vector.broadcast %cst_23 : f32 to vector<16x128xf32>
    %31 = arith.maximumf %29, %30 : vector<16x128xf32>
    %32 = arith.truncf %31 : vector<16x128xf32> to vector<16x128xbf16>
    %c0_24 = arith.constant 0 : index
    %c0_25 = arith.constant 0 : index
    %33 = vector.load %arg10[%c0_24, %c0_25] : memref<128x128xbf16, #tpu.memory_space<vmem>>, vector<128x128xbf16>
    %cst_26 = arith.constant dense<0.000000e+00> : vector<16x128xf32>
    %34 = tpu.matmul %32, %33, %cst_26 {dimension_numbers = #tpu.dot_dimension_numbers<[1], [0], [0], [1], [0, 0, 1, 1], [], []>} : vector<16x128xbf16>, vector<128x128xbf16>, vector<16x128xf32> -> vector<16x128xf32>
    %c0_27 = arith.constant 0 : index
    %c0_28 = arith.constant 0 : index
    %35 = vector.load %arg11[%c0_27, %c0_28] : memref<1x128xf32, #tpu.memory_space<vmem>>, vector<1x128xf32>
    %36 = vector.broadcast %35 : vector<1x128xf32> to vector<16x128xf32>
    %37 = arith.addf %34, %36 : vector<16x128xf32>
    %38 = arith.truncf %37 : vector<16x128xf32> to vector<16x128xbf16>
    %c0_29 = arith.constant 0 : index
    %c0_30 = arith.constant 0 : index
    %39 = vector.load %arg12[%c0_29, %c0_30] : memref<16x128xbf16, #tpu.memory_space<vmem>>, vector<16x128xbf16>
    tpu.vector_store %arg12[%c0_29, %c0_30], %38 {strides = array<i32>} : memref<16x128xbf16, #tpu.memory_space<vmem>>, vector<16x128xbf16>,
    return
  }
  func.func @transform_0(%arg0: i32) -> (i32, i32) {
    %c0_i32 = arith.constant 0 : i32
    %c0_i32_0 = arith.constant 0 : i32
    return %arg0, %c0_i32 : i32, i32
  }
  func.func @transform_1(%arg0: i32) -> (i32, i32) {
    %c0_i32 = arith.constant 0 : i32
    %c0_i32_0 = arith.constant 0 : i32
    %c0_i32_1 = arith.constant 0 : i32
    return %c0_i32, %c0_i32_0 : i32, i32
  }
  func.func @transform_2(%arg0: i32) -> (i32, i32) {
    %c0_i32 = arith.constant 0 : i32
    %c0_i32_0 = arith.constant 0 : i32
    %c0_i32_1 = arith.constant 0 : i32
    return %c0_i32, %c0_i32_0 : i32, i32
  }
  func.func @transform_3(%arg0: i32) -> (i32, i32) {
    %c0_i32 = arith.constant 0 : i32
    %c0_i32_0 = arith.constant 0 : i32
    %c0_i32_1 = arith.constant 0 : i32
    return %c0_i32, %c0_i32_0 : i32, i32
  }
  func.func @transform_4(%arg0: i32) -> (i32, i32) {
    %c0_i32 = arith.constant 0 : i32
    %c0_i32_0 = arith.constant 0 : i32
    %c0_i32_1 = arith.constant 0 : i32
    return %c0_i32, %c0_i32_0 : i32, i32
  }
  func.func @transform_5(%arg0: i32) -> (i32, i32) {
    %c0_i32 = arith.constant 0 : i32
    %c0_i32_0 = arith.constant 0 : i32
    %c0_i32_1 = arith.constant 0 : i32
    return %c0_i32, %c0_i32_0 : i32, i32
  }
  func.func @transform_6(%arg0: i32) -> (i32, i32) {
    %c0_i32 = arith.constant 0 : i32
    %c0_i32_0 = arith.constant 0 : i32
    %c0_i32_1 = arith.constant 0 : i32
    return %c0_i32, %c0_i32_0 : i32, i32
  }
  func.func @transform_7(%arg0: i32) -> (i32, i32) {
    %c0_i32 = arith.constant 0 : i32
    %c0_i32_0 = arith.constant 0 : i32
    %c0_i32_1 = arith.constant 0 : i32
    return %c0_i32, %c0_i32_0 : i32, i32
  }
  func.func @transform_8(%arg0: i32) -> (i32, i32) {
    %c0_i32 = arith.constant 0 : i32
    %c0_i32_0 = arith.constant 0 : i32
    %c0_i32_1 = arith.constant 0 : i32
    return %c0_i32, %c0_i32_0 : i32, i32
  }
  func.func @transform_9(%arg0: i32) -> (i32, i32) {
    %c0_i32 = arith.constant 0 : i32
    %c0_i32_0 = arith.constant 0 : i32
    %c0_i32_1 = arith.constant 0 : i32
    return %c0_i32, %c0_i32_0 : i32, i32
  }
  func.func @transform_10(%arg0: i32) -> (i32, i32) {
    %c0_i32 = arith.constant 0 : i32
    %c0_i32_0 = arith.constant 0 : i32
    %c0_i32_1 = arith.constant 0 : i32
    return %c0_i32, %c0_i32_0 : i32, i32
  }
  func.func @transform_11(%arg0: i32) -> (i32, i32) {
    %c0_i32 = arith.constant 0 : i32
    %c0_i32_0 = arith.constant 0 : i32
    return %arg0, %c0_i32 : i32, i32
  }
}

</mosaic_0001>

<llo_original>
// kernel: dqn_forward.1
$region0: #{dqn_forward.1}
  #allocation0 [shape = 'u32[]', space=smem, size = 0x4, offset = 0x4, fixed_abs, tag = 'smem constant byte address 0x4 - core index']
  #allocation1 [shape = 'u32[144,128]{1,0:T(1,128)}', space=vmem, size = 0x12000, scoped, tag = 'internal scratch']
  %s0 = inlined_call_operand.vmem [shape: bf16[16,128], index: 0, kind: input, shape index: {}]
  %s1 = inlined_call_operand.hbm [shape: bf16[128,512], index: 1, kind: input, shape index: {}]
  %s2 = inlined_call_operand.vmem [shape: f32[1,512], index: 2, kind: input, shape index: {}]
  %s3 = inlined_call_operand.hbm [shape: bf16[512,256], index: 3, kind: input, shape index: {}]
  %s4 = inlined_call_operand.vmem [shape: f32[1,256], index: 4, kind: input, shape index: {}]
  %s5 = inlined_call_operand.hbm [shape: bf16[256,128], index: 5, kind: input, shape index: {}]
  %s6 = inlined_call_operand.vmem [shape: f32[1,128], index: 6, kind: input, shape index: {}]
  %s7 = inlined_call_operand.hbm [shape: bf16[128,128], index: 7, kind: input, shape index: {}]
  %s8 = inlined_call_operand.vmem [shape: f32[1,128], index: 8, kind: input, shape index: {}]
  %s9 = inlined_call_operand.hbm [shape: bf16[128,128], index: 9, kind: input, shape index: {}]
  %s10 = inlined_call_operand.vmem [shape: f32[1,128], index: 10, kind: input, shape index: {}]
  %s11 = inlined_call_operand.vmem [shape: bf16[16,128], index: 11, kind: output, shape index: {}]
  %s12 = sld [smem:[#allocation0]]
  $region74: #{dqn_forward.1} parent=0
    _
  %s14 = ssub.s32 1, %s12
  %s15 = scalar_select 0, %s14, %s12
  $region1: #{dqn_forward.1} parent=0
    #allocation2 [shape = 'u8[131072]{0}', space=vmem, size = 0x20000, scoped, tag = 'input window, operand 1, single buffered']
    #allocation3 [shape = 's32[1]{0}', space=sflag, size = 0x4, scoped, tag = 'scoped memory for dqn_forward.1']
    #allocation4 [shape = 'u8[262144]{0}', space=vmem, size = 0x40000, scoped, tag = 'input window, operand 3, single buffered']
    #allocation5 [shape = 's32[1]{0}', space=sflag, size = 0x4, scoped, tag = 'scoped memory for dqn_forward.1']
    #allocation6 [shape = 'u8[65536]{0}', space=vmem, size = 0x10000, scoped, tag = 'input window, operand 5, single buffered']
    #allocation7 [shape = 'u8[32768]{0}', space=vmem, size = 0x8000, scoped, tag = 'input window, operand 7, single buffered']
    #allocation8 [shape = 's32[1]{0}', space=sflag, size = 0x4, scoped, tag = 'scoped memory for dqn_forward.1']
    #allocation9 [shape = 'u8[32768]{0}', space=vmem, size = 0x8000, scoped, tag = 'input window, operand 9, single buffered']
    %16 = vsyncpa [#allocation3], 0
    %17 = vsyncpa [#allocation5], 0
    %18 = vsyncpa [#allocation8], 0
    // Predicated region
    $region2: #{dqn_forward.1} parent=1 // pred_check
      _
    $region3: #{dqn_forward.1} parent=1 // pred_check_branch
      %20 = sbr.rel (0) target = $region5
    $region4: #{dqn_forward.1} parent=1 // pred_region
      _
    $region5: #{dqn_forward.1} parent=1 // pred_fallthru
      _
    // Predicated region
    $region6: #{dqn_forward.1} parent=1 // pred_check
      _
    $region7: #{dqn_forward.1} parent=1 // pred_check_branch
      %22 = sbr.rel (0) target = $region9
    $region8: #{dqn_forward.1} parent=1 // pred_region
      %s24 = ssub.s32 4096, 4096
      %25 = vsyncadd [#allocation3], %s24
      %s26 = sshll.u32 [#allocation2], 4
      %s27 = int_to_ptr.vmem [resolvable:$true] %s26
      %32 = dma.hbm_to_vmem [thread:$0]  %s1, 4096, %s27, [#allocation3], 256, 256, 16
    $region9: #{dqn_forward.1} parent=1 // pred_fallthru
      _
    // Predicated region
    $region10: #{dqn_forward.1} parent=1 // pred_check
      _
    $region11: #{dqn_forward.1} parent=1 // pred_check_branch
      %34 = sbr.rel (0) target = $region13
    $region12: #{dqn_forward.1} parent=1 // pred_region
      _
    $region13: #{dqn_forward.1} parent=1 // pred_fallthru
      _
    // Predicated region
    $region14: #{dqn_forward.1} parent=1 // pred_check
      _
    $region15: #{dqn_forward.1} parent=1 // pred_check_branch
      %36 = sbr.rel (0) target = $region17
    $region16: #{dqn_forward.1} parent=1 // pred_region
      %s38 = ssub.s32 8192, 8192
      %39 = vsyncadd [#allocation5], %s38
      %s40 = sshll.u32 [#allocation4], 4
      %s41 = int_to_ptr.vmem [resolvable:$true] %s40
      %46 = dma.hbm_to_vmem [thread:$0]  %s3, 8192, %s41, [#allocation5], 128, 128, 8
    $region17: #{dqn_forward.1} parent=1 // pred_fallthru
      _
    // Predicated region
    $region18: #{dqn_forward.1} parent=1 // pred_check
      _
    $region19: #{dqn_forward.1} parent=1 // pred_check_branch
      %48 = sbr.rel (0) target = $region21
    $region20: #{dqn_forward.1} parent=1 // pred_region
      _
    $region21: #{dqn_forward.1} parent=1 // pred_fallthru
      _
    // Predicated region
    $region22: #{dqn_forward.1} parent=1 // pred_check
      _
    $region23: #{dqn_forward.1} parent=1 // pred_check_branch
      %50 = sbr.rel (0) target = $region25
    $region24: #{dqn_forward.1} parent=1 // pred_region
      %s52 = ssub.s32 2048, 2048
      %53 = vsyncadd [#allocation5], %s52
      %s54 = sshll.u32 [#allocation6], 4
      %s55 = int_to_ptr.vmem [resolvable:$true] %s54
      %60 = dma.hbm_to_vmem [thread:$0]  %s5, 2048, %s55, [#allocation5], 64, 64, 4
    $region25: #{dqn_forward.1} parent=1 // pred_fallthru
      _
    // Predicated region
    $region26: #{dqn_forward.1} parent=1 // pred_check
      _
    $region27: #{dqn_forward.1} parent=1 // pred_check_branch
      %62 = sbr.rel (0) target = $region29
    $region28: #{dqn_forward.1} parent=1 // pred_region
      _
    $region29: #{dqn_forward.1} parent=1 // pred_fallthru
      _
    // Predicated region
    $region30: #{dqn_forward.1} parent=1 // pred_check
      _
    $region31: #{dqn_forward.1} parent=1 // pred_check_branch
      %64 = sbr.rel (0) target = $region33
    $region32: #{dqn_forward.1} parent=1 // pred_region
      %s66 = ssub.s32 1024, 1024
      %67 = vsyncadd [#allocation8], %s66
      %s68 = sshll.u32 [#allocation7], 4
      %s69 = int_to_ptr.vmem [resolvable:$true] %s68
      %74 = dma.hbm_to_vmem [thread:$0]  %s7, 1024, %s69, [#allocation8], 64, 64, 4
    $region33: #{dqn_forward.1} parent=1 // pred_fallthru
      _
    // Predicated region
    $region34: #{dqn_forward.1} parent=1 // pred_check
      _
    $region35: #{dqn_forward.1} parent=1 // pred_check_branch
      %76 = sbr.rel (0) target = $region37
    $region36: #{dqn_forward.1} parent=1 // pred_region
      _
    $region37: #{dqn_forward.1} parent=1 // pred_fallthru
      _
    // Predicated region
    $region38: #{dqn_forward.1} parent=1 // pred_check
      _
    $region39: #{dqn_forward.1} parent=1 // pred_check_branch
      %78 = sbr.rel (0) target = $region41
    $region40: #{dqn_forward.1} parent=1 // pred_region
      %s80 = ssub.s32 1024, 1024
      %81 = vsyncadd [#allocation8], %s80
      %s82 = sshll.u32 [#allocation9], 4
      %s83 = int_to_ptr.vmem [resolvable:$true] %s82
      %88 = dma.hbm_to_vmem [thread:$0]  %s9, 1024, %s83, [#allocation8], 64, 64, 4
    $region41: #{dqn_forward.1} parent=1 // pred_fallthru
      _
    // Predicated region
    $region42: #{dqn_forward.1} parent=1 // pred_check
      _
    $region43: #{dqn_forward.1} parent=1 // pred_check_branch
      %90 = sbr.rel (0) target = $region45
    $region44: #{dqn_forward.1} parent=1 // pred_region
      _
    $region45: #{dqn_forward.1} parent=1 // pred_fallthru
      _
    // Predicated region
    $region46: #{dqn_forward.1} parent=1 // pred_check
      _
    $region47: #{dqn_forward.1} parent=1 // pred_check_branch
      %92 = sbr.rel (0) target = $region49
    $region48: #{dqn_forward.1} parent=1 // pred_region
      %93 = dma.done [#allocation3], 4096
    $region49: #{dqn_forward.1} parent=1 // pred_fallthru
      _
    // Predicated region
    $region50: #{dqn_forward.1} parent=1 // pred_check
      _
    $region51: #{dqn_forward.1} parent=1 // pred_check_branch
      %95 = sbr.rel (0) target = $region53
    $region52: #{dqn_forward.1} parent=1 // pred_region
      %96 = dma.done [#allocation5], 8192
    $region53: #{dqn_forward.1} parent=1 // pred_fallthru
      _
    // Predicated region
    $region54: #{dqn_forward.1} parent=1 // pred_check
      _
    $region55: #{dqn_forward.1} parent=1 // pred_check_branch
      %98 = sbr.rel (0) target = $region57
    $region56: #{dqn_forward.1} parent=1 // pred_region
      %99 = dma.done [#allocation5], 2048
    $region57: #{dqn_forward.1} parent=1 // pred_fallthru
      _
    // Predicated region
    $region58: #{dqn_forward.1} parent=1 // pred_check
      _
    $region59: #{dqn_forward.1} parent=1 // pred_check_branch
      %101 = sbr.rel (0) target = $region61
    $region60: #{dqn_forward.1} parent=1 // pred_region
      %102 = dma.done [#allocation8], 1024
    $region61: #{dqn_forward.1} parent=1 // pred_fallthru
      _
    // Predicated region
    $region62: #{dqn_forward.1} parent=1 // pred_check
      _
    $region63: #{dqn_forward.1} parent=1 // pred_check_branch
      %104 = sbr.rel (0) target = $region65
    $region64: #{dqn_forward.1} parent=1 // pred_region
      %105 = dma.done [#allocation8], 1024
    $region65: #{dqn_forward.1} parent=1 // pred_fallthru
      _
    %v107 = vld [vmem:[%s0] sm:$0xf]
    %v108 = vld [vmem:[%s0 + $0x4] sm:$0xf]
    %v109 = vld [vmem:[#allocation2] sm:$0xff]
    %v110 = vld [vmem:[#allocation2 + $0x8] sm:$0xff]
    %v111 = vld [vmem:[#allocation2 + $0x10] sm:$0xff]
    %v112 = vld [vmem:[#allocation2 + $0x18] sm:$0xff]
    %v113 = vld [vmem:[#allocation2 + $0x20] sm:$0xff]
    %v114 = vld [vmem:[#allocation2 + $0x28] sm:$0xff]
    %v115 = vld [vmem:[#allocation2 + $0x30] sm:$0xff]
    %v116 = vld [vmem:[#allocation2 + $0x38] sm:$0xff]
    %v117 = vld [vmem:[#allocation2 + $0x40] sm:$0xff]
    %v118 = vld [vmem:[#allocation2 + $0x48] sm:$0xff]
    %v119 = vld [vmem:[#allocation2 + $0x50] sm:$0xff]
    %v120 = vld [vmem:[#allocation2 + $0x58] sm:$0xff]
    %v121 = vld [vmem:[#allocation2 + $0x60] sm:$0xff]
    %v122 = vld [vmem:[#allocation2 + $0x68] sm:$0xff]
    %v123 = vld [vmem:[#allocation2 + $0x70] sm:$0xff]
    %v124 = vld [vmem:[#allocation2 + $0x78] sm:$0xff]
    %v125 = vld [vmem:[#allocation2 + $0x80] sm:$0xff]
    %v126 = vld [vmem:[#allocation2 + $0x88] sm:$0xff]
    %v127 = vld [vmem:[#allocation2 + $0x90] sm:$0xff]
    %v128 = vld [vmem:[#allocation2 + $0x98] sm:$0xff]
    %v129 = vld [vmem:[#allocation2 + $0xa0] sm:$0xff]
    %v130 = vld [vmem:[#allocation2 + $0xa8] sm:$0xff]
    %v131 = vld [vmem:[#allocation2 + $0xb0] sm:$0xff]
    %v132 = vld [vmem:[#allocation2 + $0xb8] sm:$0xff]
    %v133 = vld [vmem:[#allocation2 + $0xc0] sm:$0xff]
    %v134 = vld [vmem:[#allocation2 + $0xc8] sm:$0xff]
    %v135 = vld [vmem:[#allocation2 + $0xd0] sm:$0xff]
    %v136 = vld [vmem:[#allocation2 + $0xd8] sm:$0xff]
    %v137 = vld [vmem:[#allocation2 + $0xe0] sm:$0xff]
    %v138 = vld [vmem:[#allocation2 + $0xe8] sm:$0xff]
    %v139 = vld [vmem:[#allocation2 + $0xf0] sm:$0xff]
    %v140 = vld [vmem:[#allocation2 + $0xf8] sm:$0xff]
    %v141 = vld [vmem:[%s2] sm:$0xf]
    %v143 = vlaneseq
    %v144 = vshrl.u32 %v143, 7
    %v145 = vsub.s32 0, %v144
    %v146 = vrot.slane %v141, %v145
    %v147 = vlaneseq
    %v148 = vshrl.u32 %v147, 7
    %v149 = vsub.s32 1, %v148
    %v150 = vrot.slane %v141, %v149
    %v151 = vlaneseq
    %v152 = vshrl.u32 %v151, 7
    %v153 = vsub.s32 2, %v152
    %v154 = vrot.slane %v141, %v153
    %v155 = vlaneseq
    %v156 = vshrl.u32 %v155, 7
    %v157 = vsub.s32 3, %v156
    %v158 = vrot.slane %v141, %v157
    %v165 = vunpack.c.l.b16 %v107
    %v166 = vunpack.c.l.b16 %v108
    %v167 = vpack.c.b16 %v166, %v165
    %v201 = vunpack.c.l.b16 %v109
    %v202 = vunpack.c.h.b16 %v109
    %v203 = vunpack.c.l.b16 %v110
    %v204 = vunpack.c.h.b16 %v110
    %v205 = vunpack.c.l.b16 %v111
    %v206 = vunpack.c.h.b16 %v111
    %v207 = vunpack.c.l.b16 %v112
    %v208 = vunpack.c.h.b16 %v112
    %v209 = vunpack.c.l.b16 %v113
    %v210 = vunpack.c.h.b16 %v113
    %v211 = vunpack.c.l.b16 %v114
    %v212 = vunpack.c.h.b16 %v114
    %v213 = vunpack.c.l.b16 %v115
    %v214 = vunpack.c.h.b16 %v115
    %v215 = vunpack.c.l.b16 %v116
    %v216 = vunpack.c.h.b16 %v116
    %v217 = vunpack.c.l.b16 %v117
    %v218 = vunpack.c.h.b16 %v117
    %v219 = vunpack.c.l.b16 %v118
    %v220 = vunpack.c.h.b16 %v118
    %v221 = vunpack.c.l.b16 %v119
    %v222 = vunpack.c.h.b16 %v119
    %v223 = vunpack.c.l.b16 %v120
    %v224 = vunpack.c.h.b16 %v120
    %v225 = vunpack.c.l.b16 %v121
    %v226 = vunpack.c.h.b16 %v121
    %v227 = vunpack.c.l.b16 %v122
    %v228 = vunpack.c.h.b16 %v122
    %v229 = vunpack.c.l.b16 %v123
    %v230 = vunpack.c.h.b16 %v123
    %v231 = vunpack.c.l.b16 %v124
    %v232 = vunpack.c.h.b16 %v124
    %v233 = vunpack.c.l.b16 %v125
    %v234 = vunpack.c.h.b16 %v125
    %v235 = vunpack.c.l.b16 %v126
    %v236 = vunpack.c.h.b16 %v126
    %v237 = vunpack.c.l.b16 %v127
    %v238 = vunpack.c.h.b16 %v127
    %v239 = vunpack.c.l.b16 %v128
    %v240 = vunpack.c.h.b16 %v128
    %v241 = vunpack.c.l.b16 %v129
    %v242 = vunpack.c.h.b16 %v129
    %v243 = vunpack.c.l.b16 %v130
    %v244 = vunpack.c.h.b16 %v130
    %v245 = vunpack.c.l.b16 %v131
    %v246 = vunpack.c.h.b16 %v131
    %v247 = vunpack.c.l.b16 %v132
    %v248 = vunpack.c.h.b16 %v132
    %v249 = vunpack.c.l.b16 %v133
    %v250 = vunpack.c.h.b16 %v133
    %v251 = vunpack.c.l.b16 %v134
    %v252 = vunpack.c.h.b16 %v134
    %v253 = vunpack.c.l.b16 %v135
    %v254 = vunpack.c.h.b16 %v135
    %v255 = vunpack.c.l.b16 %v136
    %v256 = vunpack.c.h.b16 %v136
    %v257 = vunpack.c.l.b16 %v137
    %v258 = vunpack.c.h.b16 %v137
    %v259 = vunpack.c.l.b16 %v138
    %v260 = vunpack.c.h.b16 %v138
    %v261 = vunpack.c.l.b16 %v139
    %v262 = vunpack.c.h.b16 %v139
    %v263 = vunpack.c.l.b16 %v140
    %v264 = vunpack.c.h.b16 %v140
    %v265 = vpack.c.b16 %v205, %v201
    %v266 = vpack.c.b16 %v206, %v202
    %v267 = vpack.c.b16 %v207, %v203
    %v268 = vpack.c.b16 %v208, %v204
    %v269 = vpack.c.b16 %v213, %v209
    %v270 = vpack.c.b16 %v214, %v210
    %v271 = vpack.c.b16 %v215, %v211
    %v272 = vpack.c.b16 %v216, %v212
    %v273 = vpack.c.b16 %v221, %v217
    %v274 = vpack.c.b16 %v222, %v218
    %v275 = vpack.c.b16 %v223, %v219
    %v276 = vpack.c.b16 %v224, %v220
    %v277 = vpack.c.b16 %v229, %v225
    %v278 = vpack.c.b16 %v230, %v226
    %v279 = vpack.c.b16 %v231, %v227
    %v280 = vpack.c.b16 %v232, %v228
    %v281 = vpack.c.b16 %v237, %v233
    %v282 = vpack.c.b16 %v238, %v234
    %v283 = vpack.c.b16 %v239, %v235
    %v284 = vpack.c.b16 %v240, %v236
    %v285 = vpack.c.b16 %v245, %v241
    %v286 = vpack.c.b16 %v246, %v242
    %v287 = vpack.c.b16 %v247, %v243
    %v288 = vpack.c.b16 %v248, %v244
    %v289 = vpack.c.b16 %v253, %v249
    %v290 = vpack.c.b16 %v254, %v250
    %v291 = vpack.c.b16 %v255, %v251
    %v292 = vpack.c.b16 %v256, %v252
    %v293 = vpack.c.b16 %v261, %v257
    %v294 = vpack.c.b16 %v262, %v258
    %v295 = vpack.c.b16 %v263, %v259
    %v296 = vpack.c.b16 %v264, %v260
    %329 = vmatprep.subr.bf16.mxu0 %v266
    %330 = vmatpush1.bf16.msra.mxu0 %v265
    %331 = vmatprep.subr.bf16.mxu0 %v270
    %332 = vmatpush1.bf16.msra.mxu0 %v269
    %333 = vmatprep.subr.bf16.mxu0 %v274
    %334 = vmatpush1.bf16.msra.mxu0 %v273
    %335 = vmatprep.subr.bf16.mxu0 %v278
    %336 = vmatpush1.bf16.msra.mxu0 %v277
    %337 = vmatprep.subr.bf16.mxu0 %v282
    %338 = vmatpush1.bf16.msra.mxu0 %v281
    %339 = vmatprep.subr.bf16.mxu0 %v286
    %340 = vmatpush1.bf16.msra.mxu0 %v285
    %341 = vmatprep.subr.bf16.mxu0 %v290
    %342 = vmatpush1.bf16.msra.mxu0 %v289
    %343 = vmatprep.subr.bf16.mxu0 %v294
    %344 = vmatpush1.bf16.msra.mxu0 %v293
    %345 = vmatprep.subr.bf16.mxu0 0
    %346 = vmatpush1.bf16.msra.mxu0 0
    %347 = vmatprep.subr.bf16.mxu0 0
    %348 = vmatpush1.bf16.msra.mxu0 0
    %349 = vmatprep.subr.bf16.mxu0 0
    %350 = vmatpush1.bf16.msra.mxu0 0
    %351 = vmatprep.subr.bf16.mxu0 0
    %352 = vmatpush1.bf16.msra.mxu0 0
    %353 = vmatprep.subr.bf16.mxu0 0
    %354 = vmatpush1.bf16.msra.mxu0 0
    %355 = vmatprep.subr.bf16.mxu0 0
    %356 = vmatpush1.bf16.msra.mxu0 0
    %357 = vmatprep.subr.bf16.mxu0 0
    %358 = vmatpush1.bf16.msra.mxu0 0
    %359 = vmatprep.subr.bf16.mxu0 0
    %360 = vmatpush1.bf16.msra.mxu0 0
    %361 = vmatprep.mubr.bf16.mxu0 0
    %362 = vmatmul.mubr.bf16.gmra.mrb[0].mxu0 %v167
    %v363 = vpop.f32.mrb[0].mxu0
    %v364 = vadd.f32 %v146, %v363
    %v365 = vpop.f32.mrb[0].mxu0
    %v366 = vadd.f32 %v150, %v365
    %v367 = vpop.f32.mrb[0].mxu0
    %v368 = vadd.f32 %v146, %v367
    %v369 = vpop.f32.mrb[0].mxu0
    %v370 = vadd.f32 %v150, %v369
    %371 = vdwg.mxu0
    %372 = vmatprep.subr.bf16.mxu0 %v268
    %373 = vmatpush1.bf16.msra.mxu0 %v267
    %374 = vmatprep.subr.bf16.mxu0 %v272
    %375 = vmatpush1.bf16.msra.mxu0 %v271
    %376 = vmatprep.subr.bf16.mxu0 %v276
    %377 = vmatpush1.bf16.msra.mxu0 %v275
    %378 = vmatprep.subr.bf16.mxu0 %v280
    %379 = vmatpush1.bf16.msra.mxu0 %v279
    %380 = vmatprep.subr.bf16.mxu0 %v284
    %381 = vmatpush1.bf16.msra.mxu0 %v283
    %382 = vmatprep.subr.bf16.mxu0 %v288
    %383 = vmatpush1.bf16.msra.mxu0 %v287
    %384 = vmatprep.subr.bf16.mxu0 %v292
    %385 = vmatpush1.bf16.msra.mxu0 %v291
    %386 = vmatprep.subr.bf16.mxu0 %v296
    %387 = vmatpush1.bf16.msra.mxu0 %v295
    %388 = vmatprep.subr.bf16.mxu0 0
    %389 = vmatpush1.bf16.msra.mxu0 0
    %390 = vmatprep.subr.bf16.mxu0 0
    %391 = vmatpush1.bf16.msra.mxu0 0
    %392 = vmatprep.subr.bf16.mxu0 0
    %393 = vmatpush1.bf16.msra.mxu0 0
    %394 = vmatprep.subr.bf16.mxu0 0
    %395 = vmatpush1.bf16.msra.mxu0 0
    %396 = vmatprep.subr.bf16.mxu0 0
    %397 = vmatpush1.bf16.msra.mxu0 0
    %398 = vmatprep.subr.bf16.mxu0 0
    %399 = vmatpush1.bf16.msra.mxu0 0
    %400 = vmatprep.subr.bf16.mxu0 0
    %401 = vmatpush1.bf16.msra.mxu0 0
    %402 = vmatprep.subr.bf16.mxu0 0
    %403 = vmatpush1.bf16.msra.mxu0 0
    %404 = vmatprep.mubr.bf16.mxu0 0
    %405 = vmatmul.mubr.bf16.gmra.mrb[0].mxu0 %v167
    %v406 = vpop.f32.mrb[0].mxu0
    %v407 = vadd.f32 %v154, %v406
    %v408 = vpop.f32.mrb[0].mxu0
    %v409 = vadd.f32 %v158, %v408
    %v410 = vpop.f32.mrb[0].mxu0
    %v411 = vadd.f32 %v154, %v410
    %v412 = vpop.f32.mrb[0].mxu0
    %v413 = vadd.f32 %v158, %v412
    %414 = vdwg.mxu0
    %v415 = vmax.f32 %v364, 0.0
    %v416 = vmax.f32 %v366, 0.0
    %v417 = vmax.f32 %v407, 0.0
    %v418 = vmax.f32 %v409, 0.0
    %v419 = vmax.f32 %v368, 0.0
    %v420 = vmax.f32 %v370, 0.0
    %v421 = vmax.f32 %v411, 0.0
    %v422 = vmax.f32 %v413, 0.0
    %v423 = vpack.c.bf16 %v419, %v415
    %v424 = vpack.c.bf16 %v420, %v416
    %v425 = vpack.c.bf16 %v421, %v417
    %v426 = vpack.c.bf16 %v422, %v418
    %v427 = vld [vmem:[#allocation4] sm:$0xff]
    %v428 = vld [vmem:[#allocation4 + $0x8] sm:$0xff]
    %v429 = vld [vmem:[#allocation4 + $0x10] sm:$0xff]
    %v430 = vld [vmem:[#allocation4 + $0x18] sm:$0xff]
    %v431 = vld [vmem:[#allocation4 + $0x20] sm:$0xff]
    %v432 = vld [vmem:[#allocation4 + $0x28] sm:$0xff]
    %v433 = vld [vmem:[#allocation4 + $0x30] sm:$0xff]
    %v434 = vld [vmem:[#allocation4 + $0x38] sm:$0xff]
    %v435 = vld [vmem:[#allocation4 + $0x40] sm:$0xff]
    %v436 = vld [vmem:[#allocation4 + $0x48] sm:$0xff]
    %v437 = vld [vmem:[#allocation4 + $0x50] sm:$0xff]
    %v438 = vld [vmem:[#allocation4 + $0x58] sm:$0xff]
    %v439 = vld [vmem:[#allocation4 + $0x60] sm:$0xff]
    %v440 = vld [vmem:[#allocation4 + $0x68] sm:$0xff]
    %v441 = vld [vmem:[#allocation4 + $0x70] sm:$0xff]
    %v442 = vld [vmem:[#allocation4 + $0x78] sm:$0xff]
    %v443 = vld [vmem:[#allocation4 + $0x80] sm:$0xff]
    %v444 = vld [vmem:[#allocation4 + $0x88] sm:$0xff]
    %v445 = vld [vmem:[#allocation4 + $0x90] sm:$0xff]
    %v446 = vld [vmem:[#allocation4 + $0x98] sm:$0xff]
    %v447 = vld [vmem:[#allocation4 + $0xa0] sm:$0xff]
    %v448 = vld [vmem:[#allocation4 + $0xa8] sm:$0xff]
    %v449 = vld [vmem:[#allocation4 + $0xb0] sm:$0xff]
    %v450 = vld [vmem:[#allocation4 + $0xb8] sm:$0xff]
    %v451 = vld [vmem:[#allocation4 + $0xc0] sm:$0xff]
    %v452 = vld [vmem:[#allocation4 + $0xc8] sm:$0xff]
    %v453 = vld [vmem:[#allocation4 + $0xd0] sm:$0xff]
    %v454 = vld [vmem:[#allocation4 + $0xd8] sm:$0xff]
    %v455 = vld [vmem:[#allocation4 + $0xe0] sm:$0xff]
    %v456 = vld [vmem:[#allocation4 + $0xe8] sm:$0xff]
    %v457 = vld [vmem:[#allocation4 + $0xf0] sm:$0xff]
    %v458 = vld [vmem:[#allocation4 + $0xf8] sm:$0xff]
    %v459 = vld [vmem:[#allocation4 + $0x100] sm:$0xff]
    %v460 = vld [vmem:[#allocation4 + $0x108] sm:$0xff]
    %v461 = vld [vmem:[#allocation4 + $0x110] sm:$0xff]
    %v462 = vld [vmem:[#allocation4 + $0x118] sm:$0xff]
    %v463 = vld [vmem:[#allocation4 + $0x120] sm:$0xff]
    %v464 = vld [vmem:[#allocation4 + $0x128] sm:$0xff]
    %v465 = vld [vmem:[#allocation4 + $0x130] sm:$0xff]
    %v466 = vld [vmem:[#allocation4 + $0x138] sm:$0xff]
    %v467 = vld [vmem:[#allocation4 + $0x140] sm:$0xff]
    %v468 = vld [vmem:[#allocation4 + $0x148] sm:$0xff]
    %v469 = vld [vmem:[#allocation4 + $0x150] sm:$0xff]
    %v470 = vld [vmem:[#allocation4 + $0x158] sm:$0xff]
    %v471 = vld [vmem:[#allocation4 + $0x160] sm:$0xff]
    %v472 = vld [vmem:[#allocation4 + $0x168] sm:$0xff]
    %v473 = vld [vmem:[#allocation4 + $0x170] sm:$0xff]
    %v474 = vld [vmem:[#allocation4 + $0x178] sm:$0xff]
    %v475 = vld [vmem:[#allocation4 + $0x180] sm:$0xff]
    %v476 = vld [vmem:[#allocation4 + $0x188] sm:$0xff]
    %v477 = vld [vmem:[#allocation4 + $0x190] sm:$0xff]
    %v478 = vld [vmem:[#allocation4 + $0x198] sm:$0xff]
    %v479 = vld [vmem:[#allocation4 + $0x1a0] sm:$0xff]
    %v480 = vld [vmem:[#allocation4 + $0x1a8] sm:$0xff]
    %v481 = vld [vmem:[#allocation4 + $0x1b0] sm:$0xff]
    %v482 = vld [vmem:[#allocation4 + $0x1b8] sm:$0xff]
    %v483 = vld [vmem:[#allocation4 + $0x1c0] sm:$0xff]
    %v484 = vld [vmem:[#allocation4 + $0x1c8] sm:$0xff]
    %v485 = vld [vmem:[#allocation4 + $0x1d0] sm:$0xff]
    %v486 = vld [vmem:[#allocation4 + $0x1d8] sm:$0xff]
    %v487 = vld [vmem:[#allocation4 + $0x1e0] sm:$0xff]
    %v488 = vld [vmem:[#allocation4 + $0x1e8] sm:$0xff]
    %v489 = vld [vmem:[#allocation4 + $0x1f0] sm:$0xff]
    %v490 = vld [vmem:[#allocation4 + $0x1f8] sm:$0xff]
    %v491 = vld [vmem:[%s4] sm:$0x3]
    %v493 = vlaneseq
    %v494 = vshrl.u32 %v493, 7
    %v495 = vsub.s32 0, %v494
    %v496 = vrot.slane %v491, %v495
    %v497 = vlaneseq
    %v498 = vshrl.u32 %v497, 7
    %v499 = vsub.s32 1, %v498
    %v500 = vrot.slane %v491, %v499
    %v567 = vunpack.c.l.b16 %v427
    %v568 = vunpack.c.h.b16 %v427
    %v569 = vunpack.c.l.b16 %v428
    %v570 = vunpack.c.h.b16 %v428
    %v571 = vunpack.c.l.b16 %v429
    %v572 = vunpack.c.h.b16 %v429
    %v573 = vunpack.c.l.b16 %v430
    %v574 = vunpack.c.h.b16 %v430
    %v575 = vunpack.c.l.b16 %v431
    %v576 = vunpack.c.h.b16 %v431
    %v577 = vunpack.c.l.b16 %v432
    %v578 = vunpack.c.h.b16 %v432
    %v579 = vunpack.c.l.b16 %v433
    %v580 = vunpack.c.h.b16 %v433
    %v581 = vunpack.c.l.b16 %v434
    %v582 = vunpack.c.h.b16 %v434
    %v583 = vunpack.c.l.b16 %v435
    %v584 = vunpack.c.h.b16 %v435
    %v585 = vunpack.c.l.b16 %v436
    %v586 = vunpack.c.h.b16 %v436
    %v587 = vunpack.c.l.b16 %v437
    %v588 = vunpack.c.h.b16 %v437
    %v589 = vunpack.c.l.b16 %v438
    %v590 = vunpack.c.h.b16 %v438
    %v591 = vunpack.c.l.b16 %v439
    %v592 = vunpack.c.h.b16 %v439
    %v593 = vunpack.c.l.b16 %v440
    %v594 = vunpack.c.h.b16 %v440
    %v595 = vunpack.c.l.b16 %v441
    %v596 = vunpack.c.h.b16 %v441
    %v597 = vunpack.c.l.b16 %v442
    %v598 = vunpack.c.h.b16 %v442
    %v599 = vunpack.c.l.b16 %v443
    %v600 = vunpack.c.h.b16 %v443
    %v601 = vunpack.c.l.b16 %v444
    %v602 = vunpack.c.h.b16 %v444
    %v603 = vunpack.c.l.b16 %v445
    %v604 = vunpack.c.h.b16 %v445
    %v605 = vunpack.c.l.b16 %v446
    %v606 = vunpack.c.h.b16 %v446
    %v607 = vunpack.c.l.b16 %v447
    %v608 = vunpack.c.h.b16 %v447
    %v609 = vunpack.c.l.b16 %v448
    %v610 = vunpack.c.h.b16 %v448
    %v611 = vunpack.c.l.b16 %v449
    %v612 = vunpack.c.h.b16 %v449
    %v613 = vunpack.c.l.b16 %v450
    %v614 = vunpack.c.h.b16 %v450
    %v615 = vunpack.c.l.b16 %v451
    %v616 = vunpack.c.h.b16 %v451
    %v617 = vunpack.c.l.b16 %v452
    %v618 = vunpack.c.h.b16 %v452
    %v619 = vunpack.c.l.b16 %v453
    %v620 = vunpack.c.h.b16 %v453
    %v621 = vunpack.c.l.b16 %v454
    %v622 = vunpack.c.h.b16 %v454
    %v623 = vunpack.c.l.b16 %v455
    %v624 = vunpack.c.h.b16 %v455
    %v625 = vunpack.c.l.b16 %v456
    %v626 = vunpack.c.h.b16 %v456
    %v627 = vunpack.c.l.b16 %v457
    %v628 = vunpack.c.h.b16 %v457
    %v629 = vunpack.c.l.b16 %v458
    %v630 = vunpack.c.h.b16 %v458
    %v631 = vunpack.c.l.b16 %v459
    %v632 = vunpack.c.h.b16 %v459
    %v633 = vunpack.c.l.b16 %v460
    %v634 = vunpack.c.h.b16 %v460
    %v635 = vunpack.c.l.b16 %v461
    %v636 = vunpack.c.h.b16 %v461
    %v637 = vunpack.c.l.b16 %v462
    %v638 = vunpack.c.h.b16 %v462
    %v639 = vunpack.c.l.b16 %v463
    %v640 = vunpack.c.h.b16 %v463
    %v641 = vunpack.c.l.b16 %v464
    %v642 = vunpack.c.h.b16 %v464
    %v643 = vunpack.c.l.b16 %v465
    %v644 = vunpack.c.h.b16 %v465
    %v645 = vunpack.c.l.b16 %v466
    %v646 = vunpack.c.h.b16 %v466
    %v647 = vunpack.c.l.b16 %v467
    %v648 = vunpack.c.h.b16 %v467
    %v649 = vunpack.c.l.b16 %v468
    %v650 = vunpack.c.h.b16 %v468
    %v651 = vunpack.c.l.b16 %v469
    %v652 = vunpack.c.h.b16 %v469
    %v653 = vunpack.c.l.b16 %v470
    %v654 = vunpack.c.h.b16 %v470
    %v655 = vunpack.c.l.b16 %v471
    %v656 = vunpack.c.h.b16 %v471
    %v657 = vunpack.c.l.b16 %v472
    %v658 = vunpack.c.h.b16 %v472
    %v659 = vunpack.c.l.b16 %v473
    %v660 = vunpack.c.h.b16 %v473
    %v661 = vunpack.c.l.b16 %v474
    %v662 = vunpack.c.h.b16 %v474
    %v663 = vunpack.c.l.b16 %v475
    %v664 = vunpack.c.h.b16 %v475
    %v665 = vunpack.c.l.b16 %v476
    %v666 = vunpack.c.h.b16 %v476
    %v667 = vunpack.c.l.b16 %v477
    %v668 = vunpack.c.h.b16 %v477
    %v669 = vunpack.c.l.b16 %v478
    %v670 = vunpack.c.h.b16 %v478
    %v671 = vunpack.c.l.b16 %v479
    %v672 = vunpack.c.h.b16 %v479
    %v673 = vunpack.c.l.b16 %v480
    %v674 = vunpack.c.h.b16 %v480
    %v675 = vunpack.c.l.b16 %v481
    %v676 = vunpack.c.h.b16 %v481
    %v677 = vunpack.c.l.b16 %v482
    %v678 = vunpack.c.h.b16 %v482
    %v679 = vunpack.c.l.b16 %v483
    %v680 = vunpack.c.h.b16 %v483
    %v681 = vunpack.c.l.b16 %v484
    %v682 = vunpack.c.h.b16 %v484
    %v683 = vunpack.c.l.b16 %v485
    %v684 = vunpack.c.h.b16 %v485
    %v685 = vunpack.c.l.b16 %v486
    %v686 = vunpack.c.h.b16 %v486
    %v687 = vunpack.c.l.b16 %v487
    %v688 = vunpack.c.h.b16 %v487
    %v689 = vunpack.c.l.b16 %v488
    %v690 = vunpack.c.h.b16 %v488
    %v691 = vunpack.c.l.b16 %v489
    %v692 = vunpack.c.h.b16 %v489
    %v693 = vunpack.c.l.b16 %v490
    %v694 = vunpack.c.h.b16 %v490
    %v695 = vpack.c.b16 %v569, %v567
    %v696 = vpack.c.b16 %v570, %v568
    %v697 = vpack.c.b16 %v573, %v571
    %v698 = vpack.c.b16 %v574, %v572
    %v699 = vpack.c.b16 %v577, %v575
    %v700 = vpack.c.b16 %v578, %v576
    %v701 = vpack.c.b16 %v581, %v579
    %v702 = vpack.c.b16 %v582, %v580
    %v703 = vpack.c.b16 %v585, %v583
    %v704 = vpack.c.b16 %v586, %v584
    %v705 = vpack.c.b16 %v589, %v587
    %v706 = vpack.c.b16 %v590, %v588
    %v707 = vpack.c.b16 %v593, %v591
    %v708 = vpack.c.b16 %v594, %v592
    %v709 = vpack.c.b16 %v597, %v595
    %v710 = vpack.c.b16 %v598, %v596
    %v711 = vpack.c.b16 %v601, %v599
    %v712 = vpack.c.b16 %v602, %v600
    %v713 = vpack.c.b16 %v605, %v603
    %v714 = vpack.c.b16 %v606, %v604
    %v715 = vpack.c.b16 %v609, %v607
    %v716 = vpack.c.b16 %v610, %v608
    %v717 = vpack.c.b16 %v613, %v611
    %v718 = vpack.c.b16 %v614, %v612
    %v719 = vpack.c.b16 %v617, %v615
    %v720 = vpack.c.b16 %v618, %v616
    %v721 = vpack.c.b16 %v621, %v619
    %v722 = vpack.c.b16 %v622, %v620
    %v723 = vpack.c.b16 %v625, %v623
    %v724 = vpack.c.b16 %v626, %v624
    %v725 = vpack.c.b16 %v629, %v627
    %v726 = vpack.c.b16 %v630, %v628
    %v727 = vpack.c.b16 %v633, %v631
    %v728 = vpack.c.b16 %v634, %v632
    %v729 = vpack.c.b16 %v637, %v635
    %v730 = vpack.c.b16 %v638, %v636
    %v731 = vpack.c.b16 %v641, %v639
    %v732 = vpack.c.b16 %v642, %v640
    %v733 = vpack.c.b16 %v645, %v643
    %v734 = vpack.c.b16 %v646, %v644
    %v735 = vpack.c.b16 %v649, %v647
    %v736 = vpack.c.b16 %v650, %v648
    %v737 = vpack.c.b16 %v653, %v651
    %v738 = vpack.c.b16 %v654, %v652
    %v739 = vpack.c.b16 %v657, %v655
    %v740 = vpack.c.b16 %v658, %v656
    %v741 = vpack.c.b16 %v661, %v659
    %v742 = vpack.c.b16 %v662, %v660
    %v743 = vpack.c.b16 %v665, %v663
    %v744 = vpack.c.b16 %v666, %v664
    %v745 = vpack.c.b16 %v669, %v667
    %v746 = vpack.c.b16 %v670, %v668
    %v747 = vpack.c.b16 %v673, %v671
    %v748 = vpack.c.b16 %v674, %v672
    %v749 = vpack.c.b16 %v677, %v675
    %v750 = vpack.c.b16 %v678, %v676
    %v751 = vpack.c.b16 %v681, %v679
    %v752 = vpack.c.b16 %v682, %v680
    %v753 = vpack.c.b16 %v685, %v683
    %v754 = vpack.c.b16 %v686, %v684
    %v755 = vpack.c.b16 %v689, %v687
    %v756 = vpack.c.b16 %v690, %v688
    %v757 = vpack.c.b16 %v693, %v691
    %v758 = vpack.c.b16 %v694, %v692
    %823 = vmatprep.subr.bf16.mxu0 %v696
    %824 = vmatpush1.bf16.msra.mxu0 %v695
    %825 = vmatprep.subr.bf16.mxu0 %v698
    %826 = vmatpush1.bf16.msra.mxu0 %v697
    %827 = vmatprep.subr.bf16.mxu0 %v700
    %828 = vmatpush1.bf16.msra.mxu0 %v699
    %829 = vmatprep.subr.bf16.mxu0 %v702
    %830 = vmatpush1.bf16.msra.mxu0 %v701
    %831 = vmatprep.subr.bf16.mxu0 %v704
    %832 = vmatpush1.bf16.msra.mxu0 %v703
    %833 = vmatprep.subr.bf16.mxu0 %v706
    %834 = vmatpush1.bf16.msra.mxu0 %v705
    %835 = vmatprep.subr.bf16.mxu0 %v708
    %836 = vmatpush1.bf16.msra.mxu0 %v707
    %837 = vmatprep.subr.bf16.mxu0 %v710
    %838 = vmatpush1.bf16.msra.mxu0 %v709
    %839 = vmatprep.subr.bf16.mxu0 %v712
    %840 = vmatpush1.bf16.msra.mxu0 %v711
    %841 = vmatprep.subr.bf16.mxu0 %v714
    %842 = vmatpush1.bf16.msra.mxu0 %v713
    %843 = vmatprep.subr.bf16.mxu0 %v716
    %844 = vmatpush1.bf16.msra.mxu0 %v715
    %845 = vmatprep.subr.bf16.mxu0 %v718
    %846 = vmatpush1.bf16.msra.mxu0 %v717
    %847 = vmatprep.subr.bf16.mxu0 %v720
    %848 = vmatpush1.bf16.msra.mxu0 %v719
    %849 = vmatprep.subr.bf16.mxu0 %v722
    %850 = vmatpush1.bf16.msra.mxu0 %v721
    %851 = vmatprep.subr.bf16.mxu0 %v724
    %852 = vmatpush1.bf16.msra.mxu0 %v723
    %853 = vmatprep.subr.bf16.mxu0 %v726
    %854 = vmatpush1.bf16.msra.mxu0 %v725
    %855 = vmatprep.mubr.bf16.mxu0 %v424
    %856 = vmatmul.mubr.bf16.gmra.mrb[0].mxu0 %v423
    %v857 = vpop.f32.mrb[0].mxu0
    %v858 = vadd.f32 %v496, %v857
    %v859 = vpop.f32.mrb[0].mxu0
    %v860 = vadd.f32 %v500, %v859
    %v861 = vpop.f32.mrb[0].mxu0
    %v862 = vadd.f32 %v496, %v861
    %v863 = vpop.f32.mrb[0].mxu0
    %v864 = vadd.f32 %v500, %v863
    %865 = vdwg.mxu0
    %866 = vmatprep.subr.bf16.mxu0 %v728
    %867 = vmatpush1.bf16.msra.mxu0 %v727
    %868 = vmatprep.subr.bf16.mxu0 %v730
    %869 = vmatpush1.bf16.msra.mxu0 %v729
    %870 = vmatprep.subr.bf16.mxu0 %v732
    %871 = vmatpush1.bf16.msra.mxu0 %v731
    %872 = vmatprep.subr.bf16.mxu0 %v734
    %873 = vmatpush1.bf16.msra.mxu0 %v733
    %874 = vmatprep.subr.bf16.mxu0 %v736
    %875 = vmatpush1.bf16.msra.mxu0 %v735
    %876 = vmatprep.subr.bf16.mxu0 %v738
    %877 = vmatpush1.bf16.msra.mxu0 %v737
    %878 = vmatprep.subr.bf16.mxu0 %v740
    %879 = vmatpush1.bf16.msra.mxu0 %v739
    %880 = vmatprep.subr.bf16.mxu0 %v742
    %881 = vmatpush1.bf16.msra.mxu0 %v741
    %882 = vmatprep.subr.bf16.mxu0 %v744
    %883 = vmatpush1.bf16.msra.mxu0 %v743
    %884 = vmatprep.subr.bf16.mxu0 %v746
    %885 = vmatpush1.bf16.msra.mxu0 %v745
    %886 = vmatprep.subr.bf16.mxu0 %v748
    %887 = vmatpush1.bf16.msra.mxu0 %v747
    %888 = vmatprep.subr.bf16.mxu0 %v750
    %889 = vmatpush1.bf16.msra.mxu0 %v749
    %890 = vmatprep.subr.bf16.mxu0 %v752
    %891 = vmatpush1.bf16.msra.mxu0 %v751
    %892 = vmatprep.subr.bf16.mxu0 %v754
    %893 = vmatpush1.bf16.msra.mxu0 %v753
    %894 = vmatprep.subr.bf16.mxu0 %v756
    %895 = vmatpush1.bf16.msra.mxu0 %v755
    %896 = vmatprep.subr.bf16.mxu0 %v758
    %897 = vmatpush1.bf16.msra.mxu0 %v757
    %898 = vmatprep.mubr.bf16.mxu0 %v426
    %899 = vmatmul.mubr.bf16.gmra.mrb[0].mxu0 %v425
    %v900 = vpop.f32.mrb[0].mxu0
    %v901 = vadd.f32 %v858, %v900
    %v902 = vpop.f32.mrb[0].mxu0
    %v903 = vadd.f32 %v860, %v902
    %v904 = vpop.f32.mrb[0].mxu0
    %v905 = vadd.f32 %v862, %v904
    %v906 = vpop.f32.mrb[0].mxu0
    %v907 = vadd.f32 %v864, %v906
    %908 = vdwg.mxu0
    %v909 = vmax.f32 %v901, 0.0
    %v910 = vmax.f32 %v903, 0.0
    %v911 = vmax.f32 %v905, 0.0
    %v912 = vmax.f32 %v907, 0.0
    %v913 = vpack.c.bf16 %v911, %v909
    %v914 = vpack.c.bf16 %v912, %v910
    %v915 = vld [vmem:[#allocation6] sm:$0xf]
    %v916 = vld [vmem:[#allocation6 + $0x4] sm:$0xf]
    %v917 = vld [vmem:[#allocation6 + $0x8] sm:$0xf]
    %v918 = vld [vmem:[#allocation6 + $0xc] sm:$0xf]
    %v919 = vld [vmem:[#allocation6 + $0x10] sm:$0xf]
    %v920 = vld [vmem:[#allocation6 + $0x14] sm:$0xf]
    %v921 = vld [vmem:[#allocation6 + $0x18] sm:$0xf]
    %v922 = vld [vmem:[#allocation6 + $0x1c] sm:$0xf]
    %v923 = vld [vmem:[#allocation6 + $0x20] sm:$0xf]
    %v924 = vld [vmem:[#allocation6 + $0x24] sm:$0xf]
    %v925 = vld [vmem:[#allocation6 + $0x28] sm:$0xf]
    %v926 = vld [vmem:[#allocation6 + $0x2c] sm:$0xf]
    %v927 = vld [vmem:[#allocation6 + $0x30] sm:$0xf]
    %v928 = vld [vmem:[#allocation6 + $0x34] sm:$0xf]
    %v929 = vld [vmem:[#allocation6 + $0x38] sm:$0xf]
    %v930 = vld [vmem:[#allocation6 + $0x3c] sm:$0xf]
    %v931 = vld [vmem:[#allocation6 + $0x40] sm:$0xf]
    %v932 = vld [vmem:[#allocation6 + $0x44] sm:$0xf]
    %v933 = vld [vmem:[#allocation6 + $0x48] sm:$0xf]
    %v934 = vld [vmem:[#allocation6 + $0x4c] sm:$0xf]
    %v935 = vld [vmem:[#allocation6 + $0x50] sm:$0xf]
    %v936 = vld [vmem:[#allocation6 + $0x54] sm:$0xf]
    %v937 = vld [vmem:[#allocation6 + $0x58] sm:$0xf]
    %v938 = vld [vmem:[#allocation6 + $0x5c] sm:$0xf]
    %v939 = vld [vmem:[#allocation6 + $0x60] sm:$0xf]
    %v940 = vld [vmem:[#allocation6 + $0x64] sm:$0xf]
    %v941 = vld [vmem:[#allocation6 + $0x68] sm:$0xf]
    %v942 = vld [vmem:[#allocation6 + $0x6c] sm:$0xf]
    %v943 = vld [vmem:[#allocation6 + $0x70] sm:$0xf]
    %v944 = vld [vmem:[#allocation6 + $0x74] sm:$0xf]
    %v945 = vld [vmem:[#allocation6 + $0x78] sm:$0xf]
    %v946 = vld [vmem:[#allocation6 + $0x7c] sm:$0xf]
    %v947 = vld [vmem:[%s6] sm:$0x1]
    %v949 = vlaneseq
    %v950 = vshrl.u32 %v949, 7
    %v951 = vsub.s32 0, %v950
    %v952 = vrot.slane %v947, %v951
    %v986 = vunpack.c.l.b16 %v915
    %v987 = vunpack.c.l.b16 %v916
    %v988 = vunpack.c.l.b16 %v917
    %v989 = vunpack.c.l.b16 %v918
    %v990 = vunpack.c.l.b16 %v919
    %v991 = vunpack.c.l.b16 %v920
    %v992 = vunpack.c.l.b16 %v921
    %v993 = vunpack.c.l.b16 %v922
    %v994 = vunpack.c.l.b16 %v923
    %v995 = vunpack.c.l.b16 %v924
    %v996 = vunpack.c.l.b16 %v925
    %v997 = vunpack.c.l.b16 %v926
    %v998 = vunpack.c.l.b16 %v927
    %v999 = vunpack.c.l.b16 %v928
    %v1000 = vunpack.c.l.b16 %v929
    %v1001 = vunpack.c.l.b16 %v930
    %v1002 = vunpack.c.l.b16 %v931
    %v1003 = vunpack.c.l.b16 %v932
    %v1004 = vunpack.c.l.b16 %v933
    %v1005 = vunpack.c.l.b16 %v934
    %v1006 = vunpack.c.l.b16 %v935
    %v1007 = vunpack.c.l.b16 %v936
    %v1008 = vunpack.c.l.b16 %v937
    %v1009 = vunpack.c.l.b16 %v938
    %v1010 = vunpack.c.l.b16 %v939
    %v1011 = vunpack.c.l.b16 %v940
    %v1012 = vunpack.c.l.b16 %v941
    %v1013 = vunpack.c.l.b16 %v942
    %v1014 = vunpack.c.l.b16 %v943
    %v1015 = vunpack.c.l.b16 %v944
    %v1016 = vunpack.c.l.b16 %v945
    %v1017 = vunpack.c.l.b16 %v946
    %v1018 = vpack.c.b16 %v987, %v986
    %v1019 = vpack.c.b16 %v989, %v988
    %v1020 = vpack.c.b16 %v991, %v990
    %v1021 = vpack.c.b16 %v993, %v992
    %v1022 = vpack.c.b16 %v995, %v994
    %v1023 = vpack.c.b16 %v997, %v996
    %v1024 = vpack.c.b16 %v999, %v998
    %v1025 = vpack.c.b16 %v1001, %v1000
    %v1026 = vpack.c.b16 %v1003, %v1002
    %v1027 = vpack.c.b16 %v1005, %v1004
    %v1028 = vpack.c.b16 %v1007, %v1006
    %v1029 = vpack.c.b16 %v1009, %v1008
    %v1030 = vpack.c.b16 %v1011, %v1010
    %v1031 = vpack.c.b16 %v1013, %v1012
    %v1032 = vpack.c.b16 %v1015, %v1014
    %v1033 = vpack.c.b16 %v1017, %v1016
    %1050 = vmatprep.subr.bf16.mxu0 0
    %1051 = vmatpush1.bf16.msra.mxu0 %v1018
    %1052 = vmatprep.subr.bf16.mxu0 0
    %1053 = vmatpush1.bf16.msra.mxu0 %v1019
    %1054 = vmatprep.subr.bf16.mxu0 0
    %1055 = vmatpush1.bf16.msra.mxu0 %v1020
    %1056 = vmatprep.subr.bf16.mxu0 0
    %1057 = vmatpush1.bf16.msra.mxu0 %v1021
    %1058 = vmatprep.subr.bf16.mxu0 0
    %1059 = vmatpush1.bf16.msra.mxu0 %v1022
    %1060 = vmatprep.subr.bf16.mxu0 0
    %1061 = vmatpush1.bf16.msra.mxu0 %v1023
    %1062 = vmatprep.subr.bf16.mxu0 0
    %1063 = vmatpush1.bf16.msra.mxu0 %v1024
    %1064 = vmatprep.subr.bf16.mxu0 0
    %1065 = vmatpush1.bf16.msra.mxu0 %v1025
    %1066 = vmatprep.subr.bf16.mxu0 0
    %1067 = vmatpush1.bf16.msra.mxu0 %v1026
    %1068 = vmatprep.subr.bf16.mxu0 0
    %1069 = vmatpush1.bf16.msra.mxu0 %v1027
    %1070 = vmatprep.subr.bf16.mxu0 0
    %1071 = vmatpush1.bf16.msra.mxu0 %v1028
    %1072 = vmatprep.subr.bf16.mxu0 0
    %1073 = vmatpush1.bf16.msra.mxu0 %v1029
    %1074 = vmatprep.subr.bf16.mxu0 0
    %1075 = vmatpush1.bf16.msra.mxu0 %v1030
    %1076 = vmatprep.subr.bf16.mxu0 0
    %1077 = vmatpush1.bf16.msra.mxu0 %v1031
    %1078 = vmatprep.subr.bf16.mxu0 0
    %1079 = vmatpush1.bf16.msra.mxu0 %v1032
    %1080 = vmatprep.subr.bf16.mxu0 0
    %1081 = vmatpush1.bf16.msra.mxu0 %v1033
    %1082 = vmatprep.mubr.bf16.mxu0 %v914
    %1083 = vmatmul.mubr.bf16.gmra.mrb[0].mxu0 %v913
    %v1084 = vpop.f32.mrb[0].mxu0
    %v1085 = vadd.f32 %v952, %v1084
    %v1086 = vpop.f32.mrb[0].mxu0
    %v1087 = vpop.f32.mrb[0].mxu0
    %v1088 = vadd.f32 %v952, %v1087
    %v1089 = vpop.f32.mrb[0].mxu0
    %1090 = vdwg.mxu0
    %v1091 = vmax.f32 %v1085, 0.0
    %v1092 = vmax.f32 %v1088, 0.0
    %v1093 = vpack.c.bf16 %v1092, %v1091
    %v1094 = vld [vmem:[#allocation7] sm:$0xf]
    %v1095 = vld [vmem:[#allocation7 + $0x4] sm:$0xf]
    %v1096 = vld [vmem:[#allocation7 + $0x8] sm:$0xf]
    %v1097 = vld [vmem:[#allocation7 + $0xc] sm:$0xf]
    %v1098 = vld [vmem:[#allocation7 + $0x10] sm:$0xf]
    %v1099 = vld [vmem:[#allocation7 + $0x14] sm:$0xf]
    %v1100 = vld [vmem:[#allocation7 + $0x18] sm:$0xf]
    %v1101 = vld [vmem:[#allocation7 + $0x1c] sm:$0xf]
    %v1102 = vld [vmem:[#allocation7 + $0x20] sm:$0xf]
    %v1103 = vld [vmem:[#allocation7 + $0x24] sm:$0xf]
    %v1104 = vld [vmem:[#allocation7 + $0x28] sm:$0xf]
    %v1105 = vld [vmem:[#allocation7 + $0x2c] sm:$0xf]
    %v1106 = vld [vmem:[#allocation7 + $0x30] sm:$0xf]
    %v1107 = vld [vmem:[#allocation7 + $0x34] sm:$0xf]
    %v1108 = vld [vmem:[#allocation7 + $0x38] sm:$0xf]
    %v1109 = vld [vmem:[#allocation7 + $0x3c] sm:$0xf]
    %v1110 = vld [vmem:[%s8] sm:$0x1]
    %v1112 = vlaneseq
    %v1113 = vshrl.u32 %v1112, 7
    %v1114 = vsub.s32 0, %v1113
    %v1115 = vrot.slane %v1110, %v1114
    %v1133 = vunpack.c.l.b16 %v1094
    %v1134 = vunpack.c.l.b16 %v1095
    %v1135 = vunpack.c.l.b16 %v1096
    %v1136 = vunpack.c.l.b16 %v1097
    %v1137 = vunpack.c.l.b16 %v1098
    %v1138 = vunpack.c.l.b16 %v1099
    %v1139 = vunpack.c.l.b16 %v1100
    %v1140 = vunpack.c.l.b16 %v1101
    %v1141 = vunpack.c.l.b16 %v1102
    %v1142 = vunpack.c.l.b16 %v1103
    %v1143 = vunpack.c.l.b16 %v1104
    %v1144 = vunpack.c.l.b16 %v1105
    %v1145 = vunpack.c.l.b16 %v1106
    %v1146 = vunpack.c.l.b16 %v1107
    %v1147 = vunpack.c.l.b16 %v1108
    %v1148 = vunpack.c.l.b16 %v1109
    %v1149 = vpack.c.b16 %v1134, %v1133
    %v1150 = vpack.c.b16 %v1136, %v1135
    %v1151 = vpack.c.b16 %v1138, %v1137
    %v1152 = vpack.c.b16 %v1140, %v1139
    %v1153 = vpack.c.b16 %v1142, %v1141
    %v1154 = vpack.c.b16 %v1144, %v1143
    %v1155 = vpack.c.b16 %v1146, %v1145
    %v1156 = vpack.c.b16 %v1148, %v1147
    %1165 = vmatprep.subr.bf16.mxu0 0
    %1166 = vmatpush1.bf16.msra.mxu0 %v1149
    %1167 = vmatprep.subr.bf16.mxu0 0
    %1168 = vmatpush1.bf16.msra.mxu0 %v1150
    %1169 = vmatprep.subr.bf16.mxu0 0
    %1170 = vmatpush1.bf16.msra.mxu0 %v1151
    %1171 = vmatprep.subr.bf16.mxu0 0
    %1172 = vmatpush1.bf16.msra.mxu0 %v1152
    %1173 = vmatprep.subr.bf16.mxu0 0
    %1174 = vmatpush1.bf16.msra.mxu0 %v1153
    %1175 = vmatprep.subr.bf16.mxu0 0
    %1176 = vmatpush1.bf16.msra.mxu0 %v1154
    %1177 = vmatprep.subr.bf16.mxu0 0
    %1178 = vmatpush1.bf16.msra.mxu0 %v1155
    %1179 = vmatprep.subr.bf16.mxu0 0
    %1180 = vmatpush1.bf16.msra.mxu0 %v1156
    %1181 = vmatprep.subr.bf16.mxu0 0
    %1182 = vmatpush1.bf16.msra.mxu0 0
    %1183 = vmatprep.subr.bf16.mxu0 0
    %1184 = vmatpush1.bf16.msra.mxu0 0
    %1185 = vmatprep.subr.bf16.mxu0 0
    %1186 = vmatpush1.bf16.msra.mxu0 0
    %1187 = vmatprep.subr.bf16.mxu0 0
    %1188 = vmatpush1.bf16.msra.mxu0 0
    %1189 = vmatprep.subr.bf16.mxu0 0
    %1190 = vmatpush1.bf16.msra.mxu0 0
    %1191 = vmatprep.subr.bf16.mxu0 0
    %1192 = vmatpush1.bf16.msra.mxu0 0
    %1193 = vmatprep.subr.bf16.mxu0 0
    %1194 = vmatpush1.bf16.msra.mxu0 0
    %1195 = vmatprep.subr.bf16.mxu0 0
    %1196 = vmatpush1.bf16.msra.mxu0 0
    %1197 = vmatprep.mubr.bf16.mxu0 0
    %1198 = vmatmul.mubr.bf16.gmra.mrb[0].mxu0 %v1093
    %v1199 = vpop.f32.mrb[0].mxu0
    %v1200 = vadd.f32 %v1115, %v1199
    %v1201 = vpop.f32.mrb[0].mxu0
    %v1202 = vpop.f32.mrb[0].mxu0
    %v1203 = vadd.f32 %v1115, %v1202
    %v1204 = vpop.f32.mrb[0].mxu0
    %1205 = vdwg.mxu0
    %v1206 = vmax.f32 %v1200, 0.0
    %v1207 = vmax.f32 %v1203, 0.0
    %v1208 = vpack.c.bf16 %v1207, %v1206
    %v1209 = vld [vmem:[#allocation9] sm:$0xf]
    %v1210 = vld [vmem:[#allocation9 + $0x4] sm:$0xf]
    %v1211 = vld [vmem:[#allocation9 + $0x8] sm:$0xf]
    %v1212 = vld [vmem:[#allocation9 + $0xc] sm:$0xf]
    %v1213 = vld [vmem:[#allocation9 + $0x10] sm:$0xf]
    %v1214 = vld [vmem:[#allocation9 + $0x14] sm:$0xf]
    %v1215 = vld [vmem:[#allocation9 + $0x18] sm:$0xf]
    %v1216 = vld [vmem:[#allocation9 + $0x1c] sm:$0xf]
    %v1217 = vld [vmem:[#allocation9 + $0x20] sm:$0xf]
    %v1218 = vld [vmem:[#allocation9 + $0x24] sm:$0xf]
    %v1219 = vld [vmem:[#allocation9 + $0x28] sm:$0xf]
    %v1220 = vld [vmem:[#allocation9 + $0x2c] sm:$0xf]
    %v1221 = vld [vmem:[#allocation9 + $0x30] sm:$0xf]
    %v1222 = vld [vmem:[#allocation9 + $0x34] sm:$0xf]
    %v1223 = vld [vmem:[#allocation9 + $0x38] sm:$0xf]
    %v1224 = vld [vmem:[#allocation9 + $0x3c] sm:$0xf]
    %v1225 = vld [vmem:[%s10] sm:$0x1]
    %v1227 = vlaneseq
    %v1228 = vshrl.u32 %v1227, 7
    %v1229 = vsub.s32 0, %v1228
    %v1230 = vrot.slane %v1225, %v1229
    %v1248 = vunpack.c.l.b16 %v1209
    %v1249 = vunpack.c.l.b16 %v1210
    %v1250 = vunpack.c.l.b16 %v1211
    %v1251 = vunpack.c.l.b16 %v1212
    %v1252 = vunpack.c.l.b16 %v1213
    %v1253 = vunpack.c.l.b16 %v1214
    %v1254 = vunpack.c.l.b16 %v1215
    %v1255 = vunpack.c.l.b16 %v1216
    %v1256 = vunpack.c.l.b16 %v1217
    %v1257 = vunpack.c.l.b16 %v1218
    %v1258 = vunpack.c.l.b16 %v1219
    %v1259 = vunpack.c.l.b16 %v1220
    %v1260 = vunpack.c.l.b16 %v1221
    %v1261 = vunpack.c.l.b16 %v1222
    %v1262 = vunpack.c.l.b16 %v1223
    %v1263 = vunpack.c.l.b16 %v1224
    %v1264 = vpack.c.b16 %v1249, %v1248
    %v1265 = vpack.c.b16 %v1251, %v1250
    %v1266 = vpack.c.b16 %v1253, %v1252
    %v1267 = vpack.c.b16 %v1255, %v1254
    %v1268 = vpack.c.b16 %v1257, %v1256
    %v1269 = vpack.c.b16 %v1259, %v1258
    %v1270 = vpack.c.b16 %v1261, %v1260
    %v1271 = vpack.c.b16 %v1263, %v1262
    %1280 = vmatprep.subr.bf16.mxu0 0
    %1281 = vmatpush1.bf16.msra.mxu0 %v1264
    %1282 = vmatprep.subr.bf16.mxu0 0
    %1283 = vmatpush1.bf16.msra.mxu0 %v1265
    %1284 = vmatprep.subr.bf16.mxu0 0
    %1285 = vmatpush1.bf16.msra.mxu0 %v1266
    %1286 = vmatprep.subr.bf16.mxu0 0
    %1287 = vmatpush1.bf16.msra.mxu0 %v1267
    %1288 = vmatprep.subr.bf16.mxu0 0
    %1289 = vmatpush1.bf16.msra.mxu0 %v1268
    %1290 = vmatprep.subr.bf16.mxu0 0
    %1291 = vmatpush1.bf16.msra.mxu0 %v1269
    %1292 = vmatprep.subr.bf16.mxu0 0
    %1293 = vmatpush1.bf16.msra.mxu0 %v1270
    %1294 = vmatprep.subr.bf16.mxu0 0
    %1295 = vmatpush1.bf16.msra.mxu0 %v1271
    %1296 = vmatprep.subr.bf16.mxu0 0
    %1297 = vmatpush1.bf16.msra.mxu0 0
    %1298 = vmatprep.subr.bf16.mxu0 0
    %1299 = vmatpush1.bf16.msra.mxu0 0
    %1300 = vmatprep.subr.bf16.mxu0 0
    %1301 = vmatpush1.bf16.msra.mxu0 0
    %1302 = vmatprep.subr.bf16.mxu0 0
    %1303 = vmatpush1.bf16.msra.mxu0 0
    %1304 = vmatprep.subr.bf16.mxu0 0
    %1305 = vmatpush1.bf16.msra.mxu0 0
    %1306 = vmatprep.subr.bf16.mxu0 0
    %1307 = vmatpush1.bf16.msra.mxu0 0
    %1308 = vmatprep.subr.bf16.mxu0 0
    %1309 = vmatpush1.bf16.msra.mxu0 0
    %1310 = vmatprep.subr.bf16.mxu0 0
    %1311 = vmatpush1.bf16.msra.mxu0 0
    %1312 = vmatprep.mubr.bf16.mxu0 0
    %1313 = vmatmul.mubr.bf16.gmra.mrb[0].mxu0 %v1208
    %v1314 = vpop.f32.mrb[0].mxu0
    %v1315 = vadd.f32 %v1230, %v1314
    %v1316 = vpop.f32.mrb[0].mxu0
    %v1317 = vpop.f32.mrb[0].mxu0
    %v1318 = vadd.f32 %v1230, %v1317
    %v1319 = vpop.f32.mrb[0].mxu0
    %1320 = vdwg.mxu0
    %v1321 = vpack.c.bf16 %v1318, %v1315
    %v1323 = vunpack.c.l.b16 %v1321
    %v1324 = vunpack.c.h.b16 %v1321
    %v1325 = vpack.c.b16 %v1323, %v1323
    %v1326 = vpack.c.b16 %v1324, %v1324
    %1329 = vst [vmem:[%s11] sm:$0xf] %v1325
    %1330 = vst [vmem:[%s11 + $0x4] sm:$0xf] %v1326
    // Predicated region
    $region66: #{dqn_forward.1} parent=1 // pred_check
      _
    $region67: #{dqn_forward.1} parent=1 // pred_check_branch
      %1332 = sbr.rel (0) target = $region69
    $region68: #{dqn_forward.1} parent=1 // pred_region
      _
    $region69: #{dqn_forward.1} parent=1 // pred_fallthru
      _
    // Predicated region
    $region70: #{dqn_forward.1} parent=1 // pred_check
      _
    $region71: #{dqn_forward.1} parent=1 // pred_check_branch
      %1334 = sbr.rel (0) target = $region73
    $region72: #{dqn_forward.1} parent=1 // pred_region
      _
    $region73: #{dqn_forward.1} parent=1 // pred_fallthru
      _
    %1335 = vsyncpa [#allocation3], 1
    %1336 = vsyncpa [#allocation5], 1
    %1337 = vsyncpa [#allocation8], 1

</llo_original>
